<compile_context>
chip_gen: v7x
topology: tpu7x:2x2x1
jax: 0.10.0
libtpu: 0.0.40
codegen_flags: <defaults>
</compile_context>

<pallas_src>
import functools

import jax
import jax.numpy as jnp
from jax.experimental import pallas as pl
from jax.experimental.pallas import tpu as pltpu

ALPHA = 0.25
GAMMA = 2          # NOTE: kernel hardcodes gamma == 2 via (1-p)*(1-p); keep in sync.
CLAMP_MIN = 0.0001
CLAMP_MAX = 1.0    # Zero-contribution masking relies on CLAMP_MAX == 1.0 exactly.

LANES = 128            # lane width (fast axis)
SUB = 8                # sublane tile height
TILE_R_MAX = 8192      # rows per grid block: 8192x128 f32 = 4 MiB / input / buffer
CHUNK_R = 256          # rows per in-kernel accumulation chunk (bounds live ranges)
_ALIGN = SUB * LANES   # kernel-visible prefix alignment (1024 elements)


def _round_up(x, m):
    return ((x + m - 1) // m) * m


def _focal_partial_kernel(pred_ref, tgt_ref, out_ref, *,
                          rows, tile_r, chunk, needs_mask):
    """One grid step: accumulate (8,128) partial focal-loss sums over tile_r rows."""
    i = pl.program_id(0)
    num_chunks = tile_r // chunk          # static
    block_row0 = i * tile_r

    def chunk_loss(c, acc):
        r0 = c * chunk
        if not isinstance(r0, int):
            r0 = pl.multiple_of(r0, chunk)
        p = pred_ref[pl.ds(r0, chunk), :].astype(jnp.float32)
        t = tgt_ref[pl.ds(r0, chunk), :].astype(jnp.float32)

        # probs = pred if target==1 else (1 - pred)  (== (cat(1-p,p)*one_hot).sum(1))
        is_pos = t >= 0.5
        probs = jnp.where(is_pos, p, 1.0 - p)
        probs = jnp.clip(probs, CLAMP_MIN, CLAMP_MAX)
        if needs_mask:
            # Rows past `rows` are the OOB tail of the last block and hold
            # garbage VMEM.  Force probs=1.0 BEFORE the log so log(1)=0 and
            # (1-1)^2=0 -> exactly zero contribution (keep this ordering!).
            row_ids = (block_row0 + r0
                       + jax.lax.broadcasted_iota(jnp.int32, (chunk, LANES), 0))
            probs = jnp.where(row_ids < rows, probs, 1.0)

        log_p = jnp.log(probs)
        alpha_t = jnp.where(is_pos, ALPHA, 1.0 - ALPHA)   # alpha / (1-alpha)
        one_minus = 1.0 - probs
        loss = -alpha_t * (one_minus * one_minus) * log_p  # gamma == 2

        # Fold (chunk,128) -> (8,128) with pure VALU adds (no cross-lane XLU
        # reduce, no loop-carried scalar); final reduce happens in the wrapper.
        return acc + loss.reshape(chunk // SUB, SUB, LANES).sum(axis=0)

    acc0 = jnp.zeros((SUB, LANES), jnp.float32)
    if num_chunks == 1:
        out_ref[0] = chunk_loss(0, acc0)
    else:
        out_ref[0] = jax.lax.fori_loop(0, num_chunks, chunk_loss, acc0,
                                       unroll=(num_chunks <= 8))


@functools.partial(jax.jit, static_argnames=("size_average",))
def focal_loss(pred, target, size_average=True):
    """Binary focal loss matching the PyTorch FocalLoss.forward semantics.

    pred:   probabilities of the positive class (any shape, float)
    target: 0/1 labels (same number of elements as pred; any numeric dtype)
    returns: scalar float32 loss (mean if size_average else sum)
    Callers should pass bf16 pred / int8 target when possible; the kernel
    upcasts in-register, so narrow inputs stream at native width.
    """
    pred_flat = jnp.reshape(pred, (-1,))
    tgt_flat = jnp.reshape(target, (-1,))
    n = pred_flat.shape[0]

    n_main = (n // _ALIGN) * _ALIGN       # largest (8*128)-aligned prefix
    tail = n - n_main

    total = jnp.zeros((), jnp.float32)

    if n_main > 0:
        rows = n_main // LANES            # multiple of SUB
        if rows <= CHUNK_R:
            tile_r = rows                 # single small block, single chunk
            chunk = rows
        else:
            # >= 2 grid blocks whenever possible (v7x megacore); tile rounded
            # to a CHUNK_R multiple so the inner loop has no remainder.
            tile_r = min(TILE_R_MAX, _round_up(pl.cdiv(rows, 2), CHUNK_R))
            chunk = CHUNK_R
        num_blocks = pl.cdiv(rows, tile_r)
        needs_mask = (rows % tile_r) != 0

        if tail == 0:
            pred_main, tgt_main = pred_flat, tgt_flat
        else:
            pred_main, tgt_main = pred_flat[:n_main], tgt_flat[:n_main]
        pred2d = pred_main.reshape(rows, LANES)
        tgt2d = tgt_main.reshape(rows, LANES)

        kernel = functools.partial(_focal_partial_kernel, rows=rows,
                                   tile_r=tile_r, chunk=chunk,
                                   needs_mask=needs_mask)

        partials = pl.pallas_call(
            kernel,
            out_shape=jax.ShapeDtypeStruct((num_blocks, SUB, LANES), jnp.float32),
            grid_spec=pltpu.PrefetchScalarGridSpec(
                num_scalar_prefetch=0,
                grid=(num_blocks,),
                in_specs=[
                    pl.BlockSpec((tile_r, LANES), lambda i: (i, 0)),
                    pl.BlockSpec((tile_r, LANES), lambda i: (i, 0)),
                ],
                out_specs=pl.BlockSpec((1, SUB, LANES), lambda i: (i, 0, 0)),
            ),
            compiler_params=pltpu.CompilerParams(
                dimension_semantics=("parallel",),      # no reduction grid axis
                vmem_limit_bytes=32 * 1024 * 1024,      # fits big double-buffers
            ),
        )(pred2d, tgt2d)
        total = total + jnp.sum(partials)

    if tail > 0:
        # < 1024 leftover elements: plain jnp, negligible cost; avoids a
        # full-array jnp.pad copy of both inputs in HBM.
        p = pred_flat[n_main:].astype(jnp.float32)
        t = tgt_flat[n_main:].astype(jnp.float32)
        is_pos = t >= 0.5
        probs = jnp.clip(jnp.where(is_pos, p, 1.0 - p), CLAMP_MIN, CLAMP_MAX)
        alpha_t = jnp.where(is_pos, ALPHA, 1.0 - ALPHA)
        total = total + jnp.sum(-alpha_t * (1.0 - probs) ** 2 * jnp.log(probs))

    if size_average:
        return total / jnp.asarray(n, jnp.float32)
    return total


def _focal_loss_ref(pred, target, size_average=True):
    """Pure-JAX reference reproducing the PyTorch forward exactly."""
    p = jnp.reshape(pred, (-1,)).astype(jnp.float32)
    t = jnp.reshape(target, (-1,)).astype(jnp.float32)
    probs = jnp.where(t >= 0.5, p, 1.0 - p)
    probs = jnp.clip(probs, CLAMP_MIN, CLAMP_MAX)
    alpha_t = jnp.where(t >= 0.5, ALPHA, 1.0 - ALPHA)
    batch_loss = -alpha_t * (1.0 - probs) ** GAMMA * jnp.log(probs)
    return jnp.mean(batch_loss) if size_average else jnp.sum(batch_loss)


if __name__ == "__main__":
    key = jax.random.PRNGKey(0)
    k1, k2, k3, k4, k5, k6 = jax.random.split(key, 6)

    # Primary small NCHW case consistent with the module: [2, 4, 16, 16].
    shape = (2, 4, 16, 16)
    pred = jax.random.uniform(k1, shape, dtype=jnp.float32)
    target = (jax.random.uniform(k2, shape) > 0.7).astype(jnp.float32)
    loss = jax.block_until_ready(focal_loss(pred, target, size_average=True))
    ref = _focal_loss_ref(pred, target, size_average=True)
    assert jnp.allclose(loss, ref, rtol=1e-5, atol=1e-6), (loss, ref)

    # Non-aligned element count (exercises the jnp tail path): 2079 elements.
    shape2 = (1, 3, 33, 21)
    pred2 = jax.random.uniform(k3, shape2, dtype=jnp.float32)
    target2 = (jax.random.uniform(k4, shape2) > 0.5).astype(jnp.float32)
    loss2 = jax.block_until_ready(focal_loss(pred2, target2, size_average=True))
    ref2 = _focal_loss_ref(pred2, target2, size_average=True)
    assert jnp.allclose(loss2, ref2, rtol=1e-5, atol=1e-6), (loss2, ref2)

    # Multi-block case with a partially-valid last block and a multi-chunk
    # in-kernel loop: 2*4*128*160 = 163840 elems -> 1280 rows, tile_r=768,
    # 2 blocks, 3 chunks/block, last block masked.
    shape3 = (2, 4, 128, 160)
    pred3 = jax.random.uniform(k5, shape3, dtype=jnp.float32)
    target3 = (jax.random.uniform(k6, shape3) > 0.8).astype(jnp.float32)
    loss3 = jax.block_until_ready(focal_loss(pred3, target3, size_average=False))
    ref3 = _focal_loss_ref(pred3, target3, size_average=False)
    assert jnp.allclose(loss3, ref3, rtol=1e-5, atol=1e-4), (loss3, ref3)

    print("KERNEL_OK")
</pallas_src>

<mosaic_0001>
module attributes {stable_mosaic.version = 11 : i64} {
  func.func @_focal_partial_kernel(%arg0: i32, %arg1: memref<16x128xf32, #tpu.memory_space<vmem>>, %arg2: memref<16x128xf32, #tpu.memory_space<vmem>>, %arg3: memref<1x8x128xf32, #tpu.memory_space<vmem>>) attributes {dimension_semantics = [#tpu.dimension_semantics<parallel>], iteration_bounds = array<i64: 1>, scalar_prefetch = 0 : i64, scratch_operands = 0 : i64, tpu.core_type = #tpu.core_type<tc>, window_params = [{transform_indices = @transform_0, window_bounds = array<i64: 16, 128>}, {transform_indices = @transform_1, window_bounds = array<i64: 16, 128>}, {transform_indices = @transform_2, window_bounds = array<i64: 1, 8, 128>}]} {
    %cst = arith.constant 0.000000e+00 : f32
    %0 = vector.broadcast %cst : f32 to vector<8x128xf32>
    %c0 = arith.constant 0 : index
    %c0_0 = arith.constant 0 : index
    %1 = vector.load %arg1[%c0, %c0_0] : memref<16x128xf32, #tpu.memory_space<vmem>>, vector<16x128xf32>
    %c0_1 = arith.constant 0 : index
    %c0_2 = arith.constant 0 : index
    %2 = vector.load %arg2[%c0_1, %c0_2] : memref<16x128xf32, #tpu.memory_space<vmem>>, vector<16x128xf32>
    %cst_3 = arith.constant 5.000000e-01 : f32
    %3 = vector.broadcast %cst_3 : f32 to vector<16x128xf32>
    %4 = arith.cmpf oge, %2, %3 : vector<16x128xf32>
    %cst_4 = arith.constant 1.000000e+00 : f32
    %5 = vector.broadcast %cst_4 : f32 to vector<16x128xf32>
    %6 = arith.subf %5, %1 : vector<16x128xf32>
    %7 = arith.select %4, %1, %6 : vector<16x128xi1>, vector<16x128xf32>
    %cst_5 = arith.constant 9.99999974E-5 : f32
    %cst_6 = arith.constant 1.000000e+00 : f32
    %8 = vector.broadcast %cst_5 : f32 to vector<16x128xf32>
    %9 = arith.maximumf %8, %7 : vector<16x128xf32>
    %10 = vector.broadcast %cst_6 : f32 to vector<16x128xf32>
    %11 = arith.minimumf %10, %9 : vector<16x128xf32>
    %12 = math.log %11 : vector<16x128xf32>
    %cst_7 = arith.constant 2.500000e-01 : f32
    %cst_8 = arith.constant 7.500000e-01 : f32
    %13 = vector.broadcast %cst_7 : f32 to vector<16x128xf32>
    %14 = vector.broadcast %cst_8 : f32 to vector<16x128xf32>
    %15 = arith.select %4, %13, %14 : vector<16x128xi1>, vector<16x128xf32>
    %cst_9 = arith.constant 1.000000e+00 : f32
    %16 = vector.broadcast %cst_9 : f32 to vector<16x128xf32>
    %17 = arith.subf %16, %11 : vector<16x128xf32>
    %cst_10 = arith.constant 0.000000e+00 : f32
    %18 = vector.broadcast %cst_10 : f32 to vector<16x128xf32>
    %19 = arith.subf %18, %15 : vector<16x128xf32>
    %20 = arith.mulf %17, %17 : vector<16x128xf32>
    %21 = arith.mulf %19, %20 : vector<16x128xf32>
    %22 = arith.mulf %21, %12 : vector<16x128xf32>
    %23 = vector.shape_cast %22 : vector<16x128xf32> to vector<2x8x128xf32>
    %cst_11 = arith.constant dense<0.000000e+00> : vector<8x128xf32>
    %24 = vector.multi_reduction <add>, %23, %cst_11 [0] : vector<2x8x128xf32> to vector<8x128xf32>
    %25 = arith.addf %0, %24 : vector<8x128xf32>
    %c0_12 = arith.constant 0 : index
    %c0_13 = arith.constant 0 : index
    %c0_14 = arith.constant 0 : index
    %26 = vector.load %arg3[%c0_12, %c0_13, %c0_14] : memref<1x8x128xf32, #tpu.memory_space<vmem>>, vector<1x8x128xf32>
    %27 = vector.shape_cast %26 : vector<1x8x128xf32> to vector<8x128xf32>
    %28 = vector.shape_cast %25 : vector<8x128xf32> to vector<1x8x128xf32>
    tpu.vector_store %arg3[%c0_12, %c0_13, %c0_14], %28 {strides = array<i32>} : memref<1x8x128xf32, #tpu.memory_space<vmem>>, vector<1x8x128xf32>,
    return
  }
  func.func @transform_0(%arg0: i32) -> (i32, i32) {
    %c0_i32 = arith.constant 0 : i32
    %c0_i32_0 = arith.constant 0 : i32
    return %arg0, %c0_i32 : i32, i32
  }
  func.func @transform_1(%arg0: i32) -> (i32, i32) {
    %c0_i32 = arith.constant 0 : i32
    %c0_i32_0 = arith.constant 0 : i32
    return %arg0, %c0_i32 : i32, i32
  }
  func.func @transform_2(%arg0: i32) -> (i32, i32, i32) {
    %c0_i32 = arith.constant 0 : i32
    %c0_i32_0 = arith.constant 0 : i32
    %c0_i32_1 = arith.constant 0 : i32
    return %arg0, %c0_i32, %c0_i32_0 : i32, i32, i32
  }
}

</mosaic_0001>

<llo_original>
// kernel: focal_loss.1
$region0: #{focal_loss.1}
  #allocation0 [shape = 'u32[]', space=smem, size = 0x4, offset = 0x4, fixed_abs, tag = 'smem constant byte address 0x4 - core index']
  #allocation1 [shape = 'u32[144,128]{1,0:T(1,128)}', space=vmem, size = 0x12000, scoped, tag = 'internal scratch']
  %s0 = inlined_call_operand.vmem [shape: f32[16,128], index: 0, kind: input, shape index: {}]
  %s1 = inlined_call_operand.vmem [shape: f32[16,128], index: 1, kind: input, shape index: {}]
  %s2 = inlined_call_operand.vmem [shape: f32[1,8,128], index: 2, kind: output, shape index: {}]
  %s3 = sld [smem:[#allocation0]]
  $region18: #{focal_loss.1} parent=0
    _
  %s5 = ssub.s32 1, %s3
  %s6 = scalar_select 0, %s5, %s3
  // Predicated region
  $region2: #{focal_loss.1} parent=0 // pred_check
    _
  $region3: #{focal_loss.1} parent=0 // pred_check_branch
    %8 = sbr.rel (0) target = $region5
  $region4: #{focal_loss.1} parent=0 // pred_region
    _
  $region5: #{focal_loss.1} parent=0 // pred_fallthru
    _
  // Predicated region
  $region6: #{focal_loss.1} parent=0 // pred_check
    _
  $region7: #{focal_loss.1} parent=0 // pred_check_branch
    %10 = sbr.rel (0) target = $region9
  $region8: #{focal_loss.1} parent=0 // pred_region
    _
  $region9: #{focal_loss.1} parent=0 // pred_fallthru
    _
  %v11 = vld [vmem:[%s0] sm:$0xff]
  %v12 = vld [vmem:[%s0 + $0x8] sm:$0xff]
  %v13 = vld [vmem:[%s1] sm:$0xff]
  %v14 = vld [vmem:[%s1 + $0x8] sm:$0xff]
  %vm15 = vcmp.ge.f32.partialorder %v13, 0.5
  %vm16 = vcmp.ge.f32.partialorder %v14, 0.5
  %v17 = vsub.f32 1.0, %v11
  %v18 = vsub.f32 1.0, %v12
  %v19 = vsel %vm15, %v11, %v17
  %v20 = vsel %vm16, %v12, %v18
  %v21 = vmax.f32 %v19, 0.0001
  %v22 = vmax.f32 %v20, 0.0001
  %v23 = vmin.f32 %v21, 1.0
  %v24 = vmin.f32 %v22, 1.0
  %v25 = vlog2.pop %v23
  %v26 = vmul.f32 %v25, 0.6931472
  %v27 = vlog2.pop %v24
  %v28 = vmul.f32 %v27, 0.6931472
  %v29 = vsel %vm15, 0.25, 0.75
  %v30 = vsel %vm16, 0.25, 0.75
  %v31 = vsub.f32 1.0, %v23
  %v32 = vsub.f32 1.0, %v24
  %v33 = vsub.f32 0.0, %v29
  %v34 = vsub.f32 0.0, %v30
  %v35 = vmul.f32 %v31, %v31
  %v36 = vmul.f32 %v32, %v32
  %v37 = vmul.f32 %v33, %v35
  %v38 = vmul.f32 %v34, %v36
  %v39 = vmul.f32 %v37, %v26
  %v40 = vmul.f32 %v38, %v28
  %v41 = vadd.f32 %v39, %v40
  %v42 = vadd.f32 %v41, 0.0
  %43 = vst [vmem:[%s2] sm:$0xff] %v42
  // Predicated region
  $region10: #{focal_loss.1} parent=0 // pred_check
    _
  $region11: #{focal_loss.1} parent=0 // pred_check_branch
    %45 = sbr.rel (0) target = $region13
  $region12: #{focal_loss.1} parent=0 // pred_region
    _
  $region13: #{focal_loss.1} parent=0 // pred_fallthru
    _
  // Predicated region
  $region14: #{focal_loss.1} parent=0 // pred_check
    _
  $region15: #{focal_loss.1} parent=0 // pred_check_branch
    %47 = sbr.rel (0) target = $region17
  $region16: #{focal_loss.1} parent=0 // pred_region
    _
  $region17: #{focal_loss.1} parent=0 // pred_fallthru
    _

</llo_original>
